<compile_context>
chip_gen: v5e
topology: v5e:2x2
jax: 0.10.0
libtpu: 0.0.40
codegen_flags: <defaults>
</compile_context>

<pallas_src>
import jax
import jax.numpy as jnp
from jax import lax
from jax.experimental import pallas as pl
from jax.experimental.pallas import tpu as pltpu

EPS = 1e-5


def _round_up(v, m):
    return (v + m - 1) // m * m


def _make_kernel(N, C, H, W):
    L = N * H * W                 # lane axis: flattened (batch, row, col)
    CP = _round_up(C, 8)          # sublane-padded channel rows (slab + per-tap group)
    # Patch matrix lives in bf16 (MXU-native).  Group the 9 taps so that every
    # store is a whole number of (16, 128) packed bf16 tiles.
    if CP % 16 == 0:
        GSTEP, G = 1, 9           # one tap group is already tile-aligned
    else:
        GSTEP, G = 2, 10          # store tap groups in pairs; group 9 is all-zero pad
    KP = G * CP                   # padded im2col contraction size
    inv_cnt = 1.0 / float(L)      # BN reduces over N*H*W elements per channel
    TAPS = [(dy - 1, dx - 1) for dy in range(3) for dx in range(3)]

    def kernel(x_ref,                               # (CP, L) input slab (rows >= C are 0)
               w1_ref, g1_ref, bt1_ref,             # conv1 weights / bn1 affine
               w2_ref, g2_ref, bt2_ref,             # conv2 weights / bn2 affine
               o_ref,                               # (CP, L) output slab
               p_ref):                              # (KP, L) bf16 im2col scratch
        # ---- hoisted lane -> (h, w) decode and edge predicates, once at (1, L) ----
        pos = lax.broadcasted_iota(jnp.int32, (1, L), 1)
        if (W & (W - 1)) == 0 and (H & (H - 1)) == 0:
            w_idx = pos & (W - 1)                   # exact int decode (pow2 sizes)
            h_idx = (pos >> (W.bit_length() - 1)) & (H - 1)
        else:
            # TODO(synk): validate vector int div/mod lowering before using
            # non-power-of-two spatial sizes (or precompute masks host-side).
            w_idx = pos % W
            h_idx = (pos // W) % H
        m_top = jnp.where(h_idx > 0, 1.0, 0.0)      # tap one row up stays in-image
        m_bot = jnp.where(h_idx < H - 1, 1.0, 0.0)  # tap one row down stays in-image
        m_lft = jnp.where(w_idx > 0, 1.0, 0.0)
        m_rgt = jnp.where(w_idx < W - 1, 1.0, 0.0)

        zero_grp = jnp.zeros((CP, L), jnp.float32)  # hoisted: reused, not re-broadcast

        def tap_val(src, oy, ox):
            """(CP, L) f32 im2col rows of tap (oy, ox): 'same' padding realized by
            zeroing out-of-image lanes; roll wrap-around lanes are always masked."""
            s = oy * W + ox                         # uniform lane shift for this tap
            v = src if s == 0 else pltpu.roll(src, (-s) % L, axis=1)
            m = None
            if oy == -1:
                m = m_top
            elif oy == 1:
                m = m_bot
            if ox == -1:
                m = m_lft if m is None else m * m_lft
            elif ox == 1:
                m = m_rgt if m is None else m * m_rgt
            return v if m is None else v * m        # (1, L) mask broadcast (VPU mul)

        def build_patches(src):
            """Fill p_ref from the (CP, L) f32 value `src` with full-tile bf16 stores."""
            for g0 in range(0, G, GSTEP):
                parts = [tap_val(src, *TAPS[g]) if g < 9 else zero_grp
                         for g in range(g0, g0 + GSTEP)]
                blk = parts[0] if GSTEP == 1 else jnp.concatenate(parts, axis=0)
                p_ref[g0 * CP:(g0 + GSTEP) * CP, :] = blk.astype(p_ref.dtype)

        def conv_bn(w_ref, g_ref, bt_ref):
            # 3x3 conv as one MXU matmul over the im2col patch matrix (bf16 x bf16,
            # f32 accumulate).  No conv bias: it cancels exactly in training-mode BN.
            y = jnp.dot(w_ref[...], p_ref[...],
                        preferred_element_type=jnp.float32)      # (CP, L) f32
            s1 = jnp.sum(y, axis=1, keepdims=True)               # fused one-pass stats
            s2 = jnp.sum(y * y, axis=1, keepdims=True)
            mean = s1 * inv_cnt
            var = s2 * inv_cnt - mean * mean                     # biased batch variance
            scale = lax.rsqrt(var + EPS) * g_ref[...]
            return (y - mean) * scale + bt_ref[...]

        x = x_ref[...]                                           # (CP, L) f32

        # ---- stage 1: conv1 -> bn1 -> relu ----
        build_patches(x)
        h1 = jnp.maximum(conv_bn(w1_ref, g1_ref, bt1_ref), 0.0)

        # ---- stage 2: conv2 -> bn2 -> +residual -> relu ----
        # h1 is (CP, L) f32 (~4 vregs) and stays in registers; padded rows of h1
        # are exactly zero (zero weight rows, zero padded beta), so stage-2
        # patches keep the same zero padding as the input slab.
        build_patches(h1)
        o_ref[...] = jnp.maximum(conv_bn(w2_ref, g2_ref, bt2_ref) + x, 0.0)

    return kernel, L, CP, G, KP


def _weight_matrix(w, C, CP, G):
    """PyTorch OIHW (C, C, 3, 3) -> (CP, G*CP) bf16; column index = tap*CP + ci
    with tap = ky*3 + kx.  Padded output rows / input channels / tap groups are
    zero so they contract to nothing against the padded patch-matrix rows."""
    w9 = jnp.transpose(w.astype(jnp.float32), (0, 2, 3, 1)).reshape(C, 9, C)
    w9 = jnp.pad(w9, ((0, CP - C), (0, G - 9), (0, CP - C)))
    return w9.reshape(CP, G * CP).astype(jnp.bfloat16)


@jax.jit
def residual_block(x, w1, g1, bt1, w2, g2, bt2):
    N, C, H, W = x.shape
    kernel, L, CP, G, KP = _make_kernel(N, C, H, W)

    # Lane-dense channels-major slab, channel rows zero-padded to CP so every
    # in-kernel row group is a full 8-sublane tile.  Layout plumbing stays in XLA.
    x_cl = jnp.pad(
        jnp.transpose(x.astype(jnp.float32), (1, 0, 2, 3)).reshape(C, L),
        ((0, CP - C), (0, 0)))

    def col(v, pad):
        return jnp.pad(v.astype(jnp.float32), (0, CP - C),
                       constant_values=pad).reshape(CP, 1)

    vmem = pl.BlockSpec(memory_space=pltpu.MemorySpace.VMEM)
    out_cl = pl.pallas_call(
        kernel,
        out_shape=jax.ShapeDtypeStruct((CP, L), jnp.float32),
        in_specs=[vmem] * 7,
        out_specs=vmem,
        scratch_shapes=[pltpu.VMEM((KP, L), jnp.bfloat16)],      # im2col patch matrix
    )(x_cl,
      _weight_matrix(w1, C, CP, G), col(g1, 1.0), col(bt1, 0.0),
      _weight_matrix(w2, C, CP, G), col(g2, 1.0), col(bt2, 0.0))

    return jnp.transpose(out_cl[:C].reshape(C, N, H, W), (1, 0, 2, 3))


def residual_block_reference(x, w1, b1, g1, bt1, w2, b2, g2, bt2):
    # pure-JAX reference mirroring the PyTorch forward (training-mode BN).
    # Note: the reference keeps the conv biases, which checks that dropping
    # them inside the kernel is exact through BatchNorm.
    def conv(x, w, b):
        y = lax.conv_general_dilated(
            x, w, window_strides=(1, 1), padding=((1, 1), (1, 1)),
            dimension_numbers=("NCHW", "OIHW", "NCHW"),
            precision=lax.Precision.HIGHEST)
        return y + b[None, :, None, None]

    def bn(x, g, bt):
        mean = jnp.mean(x, axis=(0, 2, 3), keepdims=True)
        var = jnp.mean((x - mean) ** 2, axis=(0, 2, 3), keepdims=True)
        return (x - mean) * lax.rsqrt(var + EPS) * g[None, :, None, None] \
            + bt[None, :, None, None]

    out = jnp.maximum(bn(conv(x, w1, b1), g1, bt1), 0.0)
    out = bn(conv(out, w2, b2), g2, bt2) + x
    return jnp.maximum(out, 0.0)


if __name__ == "__main__":
    N, C, H, W = 2, 4, 16, 16          # in_channels == num_channels == 4
    key = jax.random.PRNGKey(0)
    k_x, k_w1, k_b1, k_w2, k_b2 = jax.random.split(key, 5)

    # Keep test data exactly bf16-representable so the check is insensitive to
    # the bf16 MXU operand path used by the kernel.
    bf16_exact = lambda a: a.astype(jnp.bfloat16).astype(jnp.float32)
    x = bf16_exact(jax.random.normal(k_x, (N, C, H, W), jnp.float32))
    w1 = bf16_exact(0.1 * jax.random.normal(k_w1, (C, C, 3, 3), jnp.float32))
    b1 = bf16_exact(0.1 * jax.random.normal(k_b1, (C,), jnp.float32))
    w2 = bf16_exact(0.1 * jax.random.normal(k_w2, (C, C, 3, 3), jnp.float32))
    b2 = bf16_exact(0.1 * jax.random.normal(k_b2, (C,), jnp.float32))
    # BatchNorm2d default affine init: gamma = 1, beta = 0
    g1 = jnp.ones((C,), jnp.float32)
    bt1 = jnp.zeros((C,), jnp.float32)
    g2 = jnp.ones((C,), jnp.float32)
    bt2 = jnp.zeros((C,), jnp.float32)

    out = jax.block_until_ready(
        residual_block(x, w1, g1, bt1, w2, g2, bt2))
    ref = jax.block_until_ready(
        residual_block_reference(x, w1, b1, g1, bt1, w2, b2, g2, bt2))

    assert out.shape == (N, C, H, W), out.shape
    max_err = float(jnp.max(jnp.abs(out - ref)))
    # 2e-2 absolute covers the bf16 operand rounding of the stage-2 conv input
    # (the same level as the MXU default-precision f32 path the previous
    # version relied on); with full-f32 convs the error would be ~1e-6.
    if max_err < 2e-2:
        print("KERNEL_OK")
    else:
        print(f"MISMATCH max_err={max_err}")
</pallas_src>

<mosaic_0001>
module attributes {stable_mosaic.version = 11 : i64} {
  func.func @kernel(%arg0: memref<8x512xf32, #tpu.memory_space<vmem>>, %arg1: memref<8x80xbf16, #tpu.memory_space<vmem>>, %arg2: memref<8x1xf32, #tpu.memory_space<vmem>>, %arg3: memref<8x1xf32, #tpu.memory_space<vmem>>, %arg4: memref<8x80xbf16, #tpu.memory_space<vmem>>, %arg5: memref<8x1xf32, #tpu.memory_space<vmem>>, %arg6: memref<8x1xf32, #tpu.memory_space<vmem>>, %arg7: memref<8x512xf32, #tpu.memory_space<vmem>>, %arg8: memref<80x512xbf16, #tpu.memory_space<vmem>>) attributes {dimension_semantics = [], scalar_prefetch = 0 : i64, scratch_operands = 1 : i64, tpu.core_type = #tpu.core_type<tc>} {
    %0 = tpu.iota {dimensions = array<i32: 1>} : vector<1x512xi32>
    %c15_i32 = arith.constant 15 : i32
    %1 = vector.broadcast %c15_i32 : i32 to vector<1x512xi32>
    %2 = arith.andi %0, %1 : vector<1x512xi32>
    %c4_i32 = arith.constant 4 : i32
    %3 = vector.broadcast %c4_i32 : i32 to vector<1x512xi32>
    %4 = arith.shrsi %0, %3 : vector<1x512xi32>
    %c15_i32_0 = arith.constant 15 : i32
    %5 = vector.broadcast %c15_i32_0 : i32 to vector<1x512xi32>
    %6 = arith.andi %4, %5 : vector<1x512xi32>
    %c0_i32 = arith.constant 0 : i32
    %7 = vector.broadcast %c0_i32 : i32 to vector<1x512xi32>
    %8 = arith.cmpi sgt, %6, %7 : vector<1x512xi32>
    %cst = arith.constant 1.000000e+00 : f32
    %cst_1 = arith.constant 0.000000e+00 : f32
    %9 = vector.broadcast %cst : f32 to vector<1x512xf32>
    %10 = vector.broadcast %cst_1 : f32 to vector<1x512xf32>
    %11 = arith.select %8, %9, %10 : vector<1x512xi1>, vector<1x512xf32>
    %c15_i32_2 = arith.constant 15 : i32
    %12 = vector.broadcast %c15_i32_2 : i32 to vector<1x512xi32>
    %13 = arith.cmpi slt, %6, %12 : vector<1x512xi32>
    %cst_3 = arith.constant 1.000000e+00 : f32
    %cst_4 = arith.constant 0.000000e+00 : f32
    %14 = vector.broadcast %cst_3 : f32 to vector<1x512xf32>
    %15 = vector.broadcast %cst_4 : f32 to vector<1x512xf32>
    %16 = arith.select %13, %14, %15 : vector<1x512xi1>, vector<1x512xf32>
    %c0_i32_5 = arith.constant 0 : i32
    %17 = vector.broadcast %c0_i32_5 : i32 to vector<1x512xi32>
    %18 = arith.cmpi sgt, %2, %17 : vector<1x512xi32>
    %cst_6 = arith.constant 1.000000e+00 : f32
    %cst_7 = arith.constant 0.000000e+00 : f32
    %19 = vector.broadcast %cst_6 : f32 to vector<1x512xf32>
    %20 = vector.broadcast %cst_7 : f32 to vector<1x512xf32>
    %21 = arith.select %18, %19, %20 : vector<1x512xi1>, vector<1x512xf32>
    %c15_i32_8 = arith.constant 15 : i32
    %22 = vector.broadcast %c15_i32_8 : i32 to vector<1x512xi32>
    %23 = arith.cmpi slt, %2, %22 : vector<1x512xi32>
    %cst_9 = arith.constant 1.000000e+00 : f32
    %cst_10 = arith.constant 0.000000e+00 : f32
    %24 = vector.broadcast %cst_9 : f32 to vector<1x512xf32>
    %25 = vector.broadcast %cst_10 : f32 to vector<1x512xf32>
    %26 = arith.select %23, %24, %25 : vector<1x512xi1>, vector<1x512xf32>
    %cst_11 = arith.constant 0.000000e+00 : f32
    %27 = vector.broadcast %cst_11 : f32 to vector<8x512xf32>
    %c0 = arith.constant 0 : index
    %c0_12 = arith.constant 0 : index
    %28 = vector.load %arg0[%c0, %c0_12] : memref<8x512xf32, #tpu.memory_space<vmem>>, vector<8x512xf32>
    %c17_i32 = arith.constant 17 : i32
    %29 = tpu.dynamic_rotate %28 by %c17_i32 dim 1 : vector<8x512xf32>, i32 -> vector<8x512xf32>
    %30 = arith.mulf %11, %21 : vector<1x512xf32>
    %31 = vector.broadcast %30 : vector<1x512xf32> to vector<8x512xf32>
    %32 = arith.mulf %29, %31 : vector<8x512xf32>
    %c16_i32 = arith.constant 16 : i32
    %33 = tpu.dynamic_rotate %28 by %c16_i32 dim 1 : vector<8x512xf32>, i32 -> vector<8x512xf32>
    %34 = vector.broadcast %11 : vector<1x512xf32> to vector<8x512xf32>
    %35 = arith.mulf %33, %34 : vector<8x512xf32>
    %36 = tpu.concatenate %32, %35 in 0 : vector<8x512xf32>, vector<8x512xf32> -> vector<16x512xf32>
    %37 = arith.truncf %36 : vector<16x512xf32> to vector<16x512xbf16>
    %c0_13 = arith.constant 0 : index
    %c0_14 = arith.constant 0 : index
    %38 = vector.load %arg8[%c0_13, %c0_14] : memref<80x512xbf16, #tpu.memory_space<vmem>>, vector<16x512xbf16>
    tpu.vector_store %arg8[%c0_13, %c0_14], %37 {strides = array<i32>} : memref<80x512xbf16, #tpu.memory_space<vmem>>, vector<16x512xbf16>,
    %c15_i32_15 = arith.constant 15 : i32
    %39 = tpu.dynamic_rotate %28 by %c15_i32_15 dim 1 : vector<8x512xf32>, i32 -> vector<8x512xf32>
    %40 = arith.mulf %11, %26 : vector<1x512xf32>
    %41 = vector.broadcast %40 : vector<1x512xf32> to vector<8x512xf32>
    %42 = arith.mulf %39, %41 : vector<8x512xf32>
    %c1_i32 = arith.constant 1 : i32
    %43 = tpu.dynamic_rotate %28 by %c1_i32 dim 1 : vector<8x512xf32>, i32 -> vector<8x512xf32>
    %44 = vector.broadcast %21 : vector<1x512xf32> to vector<8x512xf32>
    %45 = arith.mulf %43, %44 : vector<8x512xf32>
    %46 = tpu.concatenate %42, %45 in 0 : vector<8x512xf32>, vector<8x512xf32> -> vector<16x512xf32>
    %47 = arith.truncf %46 : vector<16x512xf32> to vector<16x512xbf16>
    %c16 = arith.constant 16 : index
    %c0_16 = arith.constant 0 : index
    %48 = vector.load %arg8[%c16, %c0_16] : memref<80x512xbf16, #tpu.memory_space<vmem>>, vector<16x512xbf16>
    tpu.vector_store %arg8[%c16, %c0_16], %47 {strides = array<i32>} : memref<80x512xbf16, #tpu.memory_space<vmem>>, vector<16x512xbf16>,
    %c511_i32 = arith.constant 511 : i32
    %49 = tpu.dynamic_rotate %28 by %c511_i32 dim 1 : vector<8x512xf32>, i32 -> vector<8x512xf32>
    %50 = vector.broadcast %26 : vector<1x512xf32> to vector<8x512xf32>
    %51 = arith.mulf %49, %50 : vector<8x512xf32>
    %52 = tpu.concatenate %28, %51 in 0 : vector<8x512xf32>, vector<8x512xf32> -> vector<16x512xf32>
    %53 = arith.truncf %52 : vector<16x512xf32> to vector<16x512xbf16>
    %c32 = arith.constant 32 : index
    %c0_17 = arith.constant 0 : index
    %54 = vector.load %arg8[%c32, %c0_17] : memref<80x512xbf16, #tpu.memory_space<vmem>>, vector<16x512xbf16>
    tpu.vector_store %arg8[%c32, %c0_17], %53 {strides = array<i32>} : memref<80x512xbf16, #tpu.memory_space<vmem>>, vector<16x512xbf16>,
    %c497_i32 = arith.constant 497 : i32
    %55 = tpu.dynamic_rotate %28 by %c497_i32 dim 1 : vector<8x512xf32>, i32 -> vector<8x512xf32>
    %56 = arith.mulf %16, %21 : vector<1x512xf32>
    %57 = vector.broadcast %56 : vector<1x512xf32> to vector<8x512xf32>
    %58 = arith.mulf %55, %57 : vector<8x512xf32>
    %c496_i32 = arith.constant 496 : i32
    %59 = tpu.dynamic_rotate %28 by %c496_i32 dim 1 : vector<8x512xf32>, i32 -> vector<8x512xf32>
    %60 = vector.broadcast %16 : vector<1x512xf32> to vector<8x512xf32>
    %61 = arith.mulf %59, %60 : vector<8x512xf32>
    %62 = tpu.concatenate %58, %61 in 0 : vector<8x512xf32>, vector<8x512xf32> -> vector<16x512xf32>
    %63 = arith.truncf %62 : vector<16x512xf32> to vector<16x512xbf16>
    %c48 = arith.constant 48 : index
    %c0_18 = arith.constant 0 : index
    %64 = vector.load %arg8[%c48, %c0_18] : memref<80x512xbf16, #tpu.memory_space<vmem>>, vector<16x512xbf16>
    tpu.vector_store %arg8[%c48, %c0_18], %63 {strides = array<i32>} : memref<80x512xbf16, #tpu.memory_space<vmem>>, vector<16x512xbf16>,
    %c495_i32 = arith.constant 495 : i32
    %65 = tpu.dynamic_rotate %28 by %c495_i32 dim 1 : vector<8x512xf32>, i32 -> vector<8x512xf32>
    %66 = arith.mulf %16, %26 : vector<1x512xf32>
    %67 = vector.broadcast %66 : vector<1x512xf32> to vector<8x512xf32>
    %68 = arith.mulf %65, %67 : vector<8x512xf32>
    %69 = tpu.concatenate %68, %27 in 0 : vector<8x512xf32>, vector<8x512xf32> -> vector<16x512xf32>
    %70 = arith.truncf %69 : vector<16x512xf32> to vector<16x512xbf16>
    %c64 = arith.constant 64 : index
    %c0_19 = arith.constant 0 : index
    %71 = vector.load %arg8[%c64, %c0_19] : memref<80x512xbf16, #tpu.memory_space<vmem>>, vector<16x512xbf16>
    tpu.vector_store %arg8[%c64, %c0_19], %70 {strides = array<i32>} : memref<80x512xbf16, #tpu.memory_space<vmem>>, vector<16x512xbf16>,
    %c0_20 = arith.constant 0 : index
    %c0_21 = arith.constant 0 : index
    %72 = vector.load %arg1[%c0_20, %c0_21] : memref<8x80xbf16, #tpu.memory_space<vmem>>, vector<8x80xbf16>
    %c0_22 = arith.constant 0 : index
    %c0_23 = arith.constant 0 : index
    %73 = vector.load %arg8[%c0_22, %c0_23] : memref<80x512xbf16, #tpu.memory_space<vmem>>, vector<80x512xbf16>
    %cst_24 = arith.constant dense<0.000000e+00> : vector<8x512xf32>
    %74 = tpu.matmul %72, %73, %cst_24 {dimension_numbers = #tpu.dot_dimension_numbers<[1], [0], [0], [1], [0, 0, 1, 1], [], []>} : vector<8x80xbf16>, vector<80x512xbf16>, vector<8x512xf32> -> vector<8x512xf32>
    %cst_25 = arith.constant dense<0.000000e+00> : vector<8xf32>
    %75 = vector.multi_reduction <add>, %74, %cst_25 [1] : vector<8x512xf32> to vector<8xf32>
    %76 = vector.shape_cast %75 : vector<8xf32> to vector<8x1xf32>
    %77 = arith.mulf %74, %74 : vector<8x512xf32>
    %cst_26 = arith.constant dense<0.000000e+00> : vector<8xf32>
    %78 = vector.multi_reduction <add>, %77, %cst_26 [1] : vector<8x512xf32> to vector<8xf32>
    %79 = vector.shape_cast %78 : vector<8xf32> to vector<8x1xf32>
    %cst_27 = arith.constant 0.001953125 : f32
    %80 = vector.broadcast %cst_27 : f32 to vector<8x1xf32>
    %81 = arith.mulf %76, %80 : vector<8x1xf32>
    %cst_28 = arith.constant 0.001953125 : f32
    %82 = vector.broadcast %cst_28 : f32 to vector<8x1xf32>
    %83 = arith.mulf %79, %82 : vector<8x1xf32>
    %84 = arith.mulf %81, %81 : vector<8x1xf32>
    %85 = arith.subf %83, %84 : vector<8x1xf32>
    %cst_29 = arith.constant 9.99999974E-6 : f32
    %86 = vector.broadcast %cst_29 : f32 to vector<8x1xf32>
    %87 = arith.addf %85, %86 : vector<8x1xf32>
    %88 = math.rsqrt %87 : vector<8x1xf32>
    %c0_30 = arith.constant 0 : index
    %c0_31 = arith.constant 0 : index
    %89 = vector.load %arg2[%c0_30, %c0_31] : memref<8x1xf32, #tpu.memory_space<vmem>>, vector<8x1xf32>
    %90 = arith.mulf %88, %89 : vector<8x1xf32>
    %91 = vector.broadcast %81 : vector<8x1xf32> to vector<8x512xf32>
    %92 = arith.subf %74, %91 : vector<8x512xf32>
    %93 = vector.broadcast %90 : vector<8x1xf32> to vector<8x512xf32>
    %94 = arith.mulf %92, %93 : vector<8x512xf32>
    %c0_32 = arith.constant 0 : index
    %c0_33 = arith.constant 0 : index
    %95 = vector.load %arg3[%c0_32, %c0_33] : memref<8x1xf32, #tpu.memory_space<vmem>>, vector<8x1xf32>
    %96 = vector.broadcast %95 : vector<8x1xf32> to vector<8x512xf32>
    %97 = arith.addf %94, %96 : vector<8x512xf32>
    %cst_34 = arith.constant 0.000000e+00 : f32
    %98 = vector.broadcast %cst_34 : f32 to vector<8x512xf32>
    %99 = arith.maximumf %97, %98 : vector<8x512xf32>
    %c17_i32_35 = arith.constant 17 : i32
    %100 = tpu.dynamic_rotate %99 by %c17_i32_35 dim 1 : vector<8x512xf32>, i32 -> vector<8x512xf32>
    %101 = arith.mulf %11, %21 : vector<1x512xf32>
    %102 = vector.broadcast %101 : vector<1x512xf32> to vector<8x512xf32>
    %103 = arith.mulf %100, %102 : vector<8x512xf32>
    %c16_i32_36 = arith.constant 16 : i32
    %104 = tpu.dynamic_rotate %99 by %c16_i32_36 dim 1 : vector<8x512xf32>, i32 -> vector<8x512xf32>
    %105 = vector.broadcast %11 : vector<1x512xf32> to vector<8x512xf32>
    %106 = arith.mulf %104, %105 : vector<8x512xf32>
    %107 = tpu.concatenate %103, %106 in 0 : vector<8x512xf32>, vector<8x512xf32> -> vector<16x512xf32>
    %108 = arith.truncf %107 : vector<16x512xf32> to vector<16x512xbf16>
    %c0_37 = arith.constant 0 : index
    %c0_38 = arith.constant 0 : index
    %109 = vector.load %arg8[%c0_37, %c0_38] : memref<80x512xbf16, #tpu.memory_space<vmem>>, vector<16x512xbf16>
    tpu.vector_store %arg8[%c0_37, %c0_38], %108 {strides = array<i32>} : memref<80x512xbf16, #tpu.memory_space<vmem>>, vector<16x512xbf16>,
    %c15_i32_39 = arith.constant 15 : i32
    %110 = tpu.dynamic_rotate %99 by %c15_i32_39 dim 1 : vector<8x512xf32>, i32 -> vector<8x512xf32>
    %111 = arith.mulf %11, %26 : vector<1x512xf32>
    %112 = vector.broadcast %111 : vector<1x512xf32> to vector<8x512xf32>
    %113 = arith.mulf %110, %112 : vector<8x512xf32>
    %c1_i32_40 = arith.constant 1 : i32
    %114 = tpu.dynamic_rotate %99 by %c1_i32_40 dim 1 : vector<8x512xf32>, i32 -> vector<8x512xf32>
    %115 = vector.broadcast %21 : vector<1x512xf32> to vector<8x512xf32>
    %116 = arith.mulf %114, %115 : vector<8x512xf32>
    %117 = tpu.concatenate %113, %116 in 0 : vector<8x512xf32>, vector<8x512xf32> -> vector<16x512xf32>
    %118 = arith.truncf %117 : vector<16x512xf32> to vector<16x512xbf16>
    %c16_41 = arith.constant 16 : index
    %c0_42 = arith.constant 0 : index
    %119 = vector.load %arg8[%c16_41, %c0_42] : memref<80x512xbf16, #tpu.memory_space<vmem>>, vector<16x512xbf16>
    tpu.vector_store %arg8[%c16_41, %c0_42], %118 {strides = array<i32>} : memref<80x512xbf16, #tpu.memory_space<vmem>>, vector<16x512xbf16>,
    %c511_i32_43 = arith.constant 511 : i32
    %120 = tpu.dynamic_rotate %99 by %c511_i32_43 dim 1 : vector<8x512xf32>, i32 -> vector<8x512xf32>
    %121 = vector.broadcast %26 : vector<1x512xf32> to vector<8x512xf32>
    %122 = arith.mulf %120, %121 : vector<8x512xf32>
    %123 = tpu.concatenate %99, %122 in 0 : vector<8x512xf32>, vector<8x512xf32> -> vector<16x512xf32>
    %124 = arith.truncf %123 : vector<16x512xf32> to vector<16x512xbf16>
    %c32_44 = arith.constant 32 : index
    %c0_45 = arith.constant 0 : index
    %125 = vector.load %arg8[%c32_44, %c0_45] : memref<80x512xbf16, #tpu.memory_space<vmem>>, vector<16x512xbf16>
    tpu.vector_store %arg8[%c32_44, %c0_45], %124 {strides = array<i32>} : memref<80x512xbf16, #tpu.memory_space<vmem>>, vector<16x512xbf16>,
    %c497_i32_46 = arith.constant 497 : i32
    %126 = tpu.dynamic_rotate %99 by %c497_i32_46 dim 1 : vector<8x512xf32>, i32 -> vector<8x512xf32>
    %127 = arith.mulf %16, %21 : vector<1x512xf32>
    %128 = vector.broadcast %127 : vector<1x512xf32> to vector<8x512xf32>
    %129 = arith.mulf %126, %128 : vector<8x512xf32>
    %c496_i32_47 = arith.constant 496 : i32
    %130 = tpu.dynamic_rotate %99 by %c496_i32_47 dim 1 : vector<8x512xf32>, i32 -> vector<8x512xf32>
    %131 = vector.broadcast %16 : vector<1x512xf32> to vector<8x512xf32>
    %132 = arith.mulf %130, %131 : vector<8x512xf32>
    %133 = tpu.concatenate %129, %132 in 0 : vector<8x512xf32>, vector<8x512xf32> -> vector<16x512xf32>
    %134 = arith.truncf %133 : vector<16x512xf32> to vector<16x512xbf16>
    %c48_48 = arith.constant 48 : index
    %c0_49 = arith.constant 0 : index
    %135 = vector.load %arg8[%c48_48, %c0_49] : memref<80x512xbf16, #tpu.memory_space<vmem>>, vector<16x512xbf16>
    tpu.vector_store %arg8[%c48_48, %c0_49], %134 {strides = array<i32>} : memref<80x512xbf16, #tpu.memory_space<vmem>>, vector<16x512xbf16>,
    %c495_i32_50 = arith.constant 495 : i32
    %136 = tpu.dynamic_rotate %99 by %c495_i32_50 dim 1 : vector<8x512xf32>, i32 -> vector<8x512xf32>
    %137 = arith.mulf %16, %26 : vector<1x512xf32>
    %138 = vector.broadcast %137 : vector<1x512xf32> to vector<8x512xf32>
    %139 = arith.mulf %136, %138 : vector<8x512xf32>
    %140 = tpu.concatenate %139, %27 in 0 : vector<8x512xf32>, vector<8x512xf32> -> vector<16x512xf32>
    %141 = arith.truncf %140 : vector<16x512xf32> to vector<16x512xbf16>
    %c64_51 = arith.constant 64 : index
    %c0_52 = arith.constant 0 : index
    %142 = vector.load %arg8[%c64_51, %c0_52] : memref<80x512xbf16, #tpu.memory_space<vmem>>, vector<16x512xbf16>
    tpu.vector_store %arg8[%c64_51, %c0_52], %141 {strides = array<i32>} : memref<80x512xbf16, #tpu.memory_space<vmem>>, vector<16x512xbf16>,
    %c0_53 = arith.constant 0 : index
    %c0_54 = arith.constant 0 : index
    %143 = vector.load %arg4[%c0_53, %c0_54] : memref<8x80xbf16, #tpu.memory_space<vmem>>, vector<8x80xbf16>
    %c0_55 = arith.constant 0 : index
    %c0_56 = arith.constant 0 : index
    %144 = vector.load %arg8[%c0_55, %c0_56] : memref<80x512xbf16, #tpu.memory_space<vmem>>, vector<80x512xbf16>
    %cst_57 = arith.constant dense<0.000000e+00> : vector<8x512xf32>
    %145 = tpu.matmul %143, %144, %cst_57 {dimension_numbers = #tpu.dot_dimension_numbers<[1], [0], [0], [1], [0, 0, 1, 1], [], []>} : vector<8x80xbf16>, vector<80x512xbf16>, vector<8x512xf32> -> vector<8x512xf32>
    %cst_58 = arith.constant dense<0.000000e+00> : vector<8xf32>
    %146 = vector.multi_reduction <add>, %145, %cst_58 [1] : vector<8x512xf32> to vector<8xf32>
    %147 = vector.shape_cast %146 : vector<8xf32> to vector<8x1xf32>
    %148 = arith.mulf %145, %145 : vector<8x512xf32>
    %cst_59 = arith.constant dense<0.000000e+00> : vector<8xf32>
    %149 = vector.multi_reduction <add>, %148, %cst_59 [1] : vector<8x512xf32> to vector<8xf32>
    %150 = vector.shape_cast %149 : vector<8xf32> to vector<8x1xf32>
    %cst_60 = arith.constant 0.001953125 : f32
    %151 = vector.broadcast %cst_60 : f32 to vector<8x1xf32>
    %152 = arith.mulf %147, %151 : vector<8x1xf32>
    %cst_61 = arith.constant 0.001953125 : f32
    %153 = vector.broadcast %cst_61 : f32 to vector<8x1xf32>
    %154 = arith.mulf %150, %153 : vector<8x1xf32>
    %155 = arith.mulf %152, %152 : vector<8x1xf32>
    %156 = arith.subf %154, %155 : vector<8x1xf32>
    %cst_62 = arith.constant 9.99999974E-6 : f32
    %157 = vector.broadcast %cst_62 : f32 to vector<8x1xf32>
    %158 = arith.addf %156, %157 : vector<8x1xf32>
    %159 = math.rsqrt %158 : vector<8x1xf32>
    %c0_63 = arith.constant 0 : index
    %c0_64 = arith.constant 0 : index
    %160 = vector.load %arg5[%c0_63, %c0_64] : memref<8x1xf32, #tpu.memory_space<vmem>>, vector<8x1xf32>
    %161 = arith.mulf %159, %160 : vector<8x1xf32>
    %162 = vector.broadcast %152 : vector<8x1xf32> to vector<8x512xf32>
    %163 = arith.subf %145, %162 : vector<8x512xf32>
    %164 = vector.broadcast %161 : vector<8x1xf32> to vector<8x512xf32>
    %165 = arith.mulf %163, %164 : vector<8x512xf32>
    %c0_65 = arith.constant 0 : index
    %c0_66 = arith.constant 0 : index
    %166 = vector.load %arg6[%c0_65, %c0_66] : memref<8x1xf32, #tpu.memory_space<vmem>>, vector<8x1xf32>
    %167 = vector.broadcast %166 : vector<8x1xf32> to vector<8x512xf32>
    %168 = arith.addf %165, %167 : vector<8x512xf32>
    %169 = arith.addf %168, %28 : vector<8x512xf32>
    %cst_67 = arith.constant 0.000000e+00 : f32
    %170 = vector.broadcast %cst_67 : f32 to vector<8x512xf32>
    %171 = arith.maximumf %169, %170 : vector<8x512xf32>
    %c0_68 = arith.constant 0 : index
    %c0_69 = arith.constant 0 : index
    %172 = vector.load %arg7[%c0_68, %c0_69] : memref<8x512xf32, #tpu.memory_space<vmem>>, vector<8x512xf32>
    tpu.vector_store %arg7[%c0_68, %c0_69], %171 {strides = array<i32>} : memref<8x512xf32, #tpu.memory_space<vmem>>, vector<8x512xf32>,
    return
  }
}

</mosaic_0001>

<llo_original>
// kernel: residual_block.1
$region0: #{residual_block.1}
  #allocation0 [shape = 'u32[]', space=smem, size = 0x4, offset = 0x4, fixed_abs, tag = 'smem constant byte address 0x4 - core index']
  #allocation1 [shape = 'u32[72,128]{1,0:T(1,128)}', space=vmem, size = 0x9000, scoped, tag = 'internal scratch']
  #allocation2 [shape = 'bf16[80,512]{1,0:T(8,128)(2,1)}', space=vmem, size = 0x14000, scoped, tag = 'scratch operand']
  %s0 = inlined_call_operand.vmem [shape: f32[8,512], index: 0, kind: input, shape index: {}]
  %s1 = inlined_call_operand.vmem [shape: bf16[8,80], index: 1, kind: input, shape index: {}]
  %s2 = inlined_call_operand.vmem [shape: f32[8,1], index: 2, kind: input, shape index: {}]
  %s3 = inlined_call_operand.vmem [shape: f32[8,1], index: 3, kind: input, shape index: {}]
  %s4 = inlined_call_operand.vmem [shape: bf16[8,80], index: 4, kind: input, shape index: {}]
  %s5 = inlined_call_operand.vmem [shape: f32[8,1], index: 5, kind: input, shape index: {}]
  %s6 = inlined_call_operand.vmem [shape: f32[8,1], index: 6, kind: input, shape index: {}]
  %s7 = inlined_call_operand.vmem [shape: f32[8,512], index: 7, kind: output, shape index: {}]
  %s8 = sld [smem:[#allocation0]]
  $region38: #{residual_block.1} parent=0
    _
  %s10 = ssub.s32 1, %s8
  %s11 = scalar_select 0, %s10, %s8
  // Predicated region
  $region2: #{residual_block.1} parent=0 // pred_check
    _
  $region3: #{residual_block.1} parent=0 // pred_check_branch
    %13 = sbr.rel (0) target = $region5
  $region4: #{residual_block.1} parent=0 // pred_region
    _
  $region5: #{residual_block.1} parent=0 // pred_fallthru
    _
  // Predicated region
  $region6: #{residual_block.1} parent=0 // pred_check
    _
  $region7: #{residual_block.1} parent=0 // pred_check_branch
    %15 = sbr.rel (0) target = $region9
  $region8: #{residual_block.1} parent=0 // pred_region
    _
  $region9: #{residual_block.1} parent=0 // pred_fallthru
    _
  // Predicated region
  $region10: #{residual_block.1} parent=0 // pred_check
    _
  $region11: #{residual_block.1} parent=0 // pred_check_branch
    %17 = sbr.rel (0) target = $region13
  $region12: #{residual_block.1} parent=0 // pred_region
    _
  $region13: #{residual_block.1} parent=0 // pred_fallthru
    _
  // Predicated region
  $region14: #{residual_block.1} parent=0 // pred_check
    _
  $region15: #{residual_block.1} parent=0 // pred_check_branch
    %19 = sbr.rel (0) target = $region17
  $region16: #{residual_block.1} parent=0 // pred_region
    _
  $region17: #{residual_block.1} parent=0 // pred_fallthru
    _
  // Predicated region
  $region18: #{residual_block.1} parent=0 // pred_check
    _
  $region19: #{residual_block.1} parent=0 // pred_check_branch
    %21 = sbr.rel (0) target = $region21
  $region20: #{residual_block.1} parent=0 // pred_region
    _
  $region21: #{residual_block.1} parent=0 // pred_fallthru
    _
  // Predicated region
  $region22: #{residual_block.1} parent=0 // pred_check
    _
  $region23: #{residual_block.1} parent=0 // pred_check_branch
    %23 = sbr.rel (0) target = $region25
  $region24: #{residual_block.1} parent=0 // pred_region
    _
  $region25: #{residual_block.1} parent=0 // pred_fallthru
    _
  // Predicated region
  $region26: #{residual_block.1} parent=0 // pred_check
    _
  $region27: #{residual_block.1} parent=0 // pred_check_branch
    %25 = sbr.rel (0) target = $region29
  $region28: #{residual_block.1} parent=0 // pred_region
    _
  $region29: #{residual_block.1} parent=0 // pred_fallthru
    _
  %v27 = vlaneseq
  %v28 = vand.u32 %v27, 127
  %v29 = vadd.s32 %v28, 128
  %v30 = vadd.s32 %v28, 256
  %v31 = vadd.s32 %v28, 384
  %v32 = vand.u32 %v28, 15
  %v33 = vand.u32 %v29, 15
  %v34 = vand.u32 %v30, 15
  %v35 = vand.u32 %v31, 15
  %v36 = vshra.s32 %v28, 4
  %v37 = vshra.s32 %v29, 4
  %v38 = vshra.s32 %v30, 4
  %v39 = vshra.s32 %v31, 4
  %v40 = vand.u32 %v36, 15
  %v41 = vand.u32 %v37, 15
  %v42 = vand.u32 %v38, 15
  %v43 = vand.u32 %v39, 15
  %vm44 = vcmp.gt.s32.totalorder %v40, 0
  %vm45 = vcmp.gt.s32.totalorder %v41, 0
  %vm46 = vcmp.gt.s32.totalorder %v42, 0
  %vm47 = vcmp.gt.s32.totalorder %v43, 0
  %v48 = vsel %vm44, 1.0, 0.0
  %v49 = vsel %vm45, 1.0, 0.0
  %v50 = vsel %vm46, 1.0, 0.0
  %v51 = vsel %vm47, 1.0, 0.0
  %vm52 = vcmp.lt.s32.totalorder %v40, 15
  %vm53 = vcmp.lt.s32.totalorder %v41, 15
  %vm54 = vcmp.lt.s32.totalorder %v42, 15
  %vm55 = vcmp.lt.s32.totalorder %v43, 15
  %v56 = vsel %vm52, 1.0, 0.0
  %v57 = vsel %vm53, 1.0, 0.0
  %v58 = vsel %vm54, 1.0, 0.0
  %v59 = vsel %vm55, 1.0, 0.0
  %vm60 = vcmp.gt.s32.totalorder %v32, 0
  %vm61 = vcmp.gt.s32.totalorder %v33, 0
  %vm62 = vcmp.gt.s32.totalorder %v34, 0
  %vm63 = vcmp.gt.s32.totalorder %v35, 0
  %v64 = vsel %vm60, 1.0, 0.0
  %v65 = vsel %vm61, 1.0, 0.0
  %v66 = vsel %vm62, 1.0, 0.0
  %v67 = vsel %vm63, 1.0, 0.0
  %vm68 = vcmp.lt.s32.totalorder %v32, 15
  %vm69 = vcmp.lt.s32.totalorder %v33, 15
  %vm70 = vcmp.lt.s32.totalorder %v34, 15
  %vm71 = vcmp.lt.s32.totalorder %v35, 15
  %v72 = vsel %vm68, 1.0, 0.0
  %v73 = vsel %vm69, 1.0, 0.0
  %v74 = vsel %vm70, 1.0, 0.0
  %v75 = vsel %vm71, 1.0, 0.0
  %v76 = vld [vmem:[%s0] sm:$0xff]
  %v77 = vld [vmem:[%s0 + $0x8] sm:$0xff]
  %v78 = vld [vmem:[%s0 + $0x10] sm:$0xff]
  %v79 = vld [vmem:[%s0 + $0x18] sm:$0xff]
  %80 = vrot.lane.b32.xlu0 %v76, 17
  %v81 = vpop.permute.xlu0 %80
  %82 = vrot.lane.b32.xlu0 %v77, 17
  %v83 = vpop.permute.xlu0 %82
  %84 = vrot.lane.b32.xlu0 %v78, 17
  %v85 = vpop.permute.xlu0 %84
  %86 = vrot.lane.b32.xlu0 %v79, 17
  %v87 = vpop.permute.xlu0 %86
  %vm88 = vcmp.lt.s32.totalorder %v28, 17
  %v89 = vsel %vm88, %v85, %v87
  %v90 = vsel %vm88, %v83, %v85
  %v91 = vsel %vm88, %v81, %v83
  %v92 = vsel %vm88, %v87, %v81
  %v93 = vmul.f32 %v48, %v64
  %v94 = vmul.f32 %v49, %v65
  %v95 = vmul.f32 %v50, %v66
  %v96 = vmul.f32 %v51, %v67
  %v97 = vmul.f32 %v92, %v93
  %v98 = vmul.f32 %v91, %v94
  %v99 = vmul.f32 %v90, %v95
  %v100 = vmul.f32 %v89, %v96
  %101 = vrot.lane.b32.xlu0 %v76, 16
  %v102 = vpop.permute.xlu0 %101
  %103 = vrot.lane.b32.xlu0 %v77, 16
  %v104 = vpop.permute.xlu0 %103
  %105 = vrot.lane.b32.xlu0 %v78, 16
  %v106 = vpop.permute.xlu0 %105
  %107 = vrot.lane.b32.xlu0 %v79, 16
  %v108 = vpop.permute.xlu0 %107
  %vm109 = vcmp.lt.s32.totalorder %v28, 16
  %v110 = vsel %vm109, %v106, %v108
  %v111 = vsel %vm109, %v104, %v106
  %v112 = vsel %vm109, %v102, %v104
  %v113 = vsel %vm109, %v108, %v102
  %v114 = vmul.f32 %v113, %v48
  %v115 = vmul.f32 %v112, %v49
  %v116 = vmul.f32 %v111, %v50
  %v117 = vmul.f32 %v110, %v51
  %v118 = vpack.c.bf16 %v98, %v97
  %v119 = vpack.c.bf16 %v100, %v99
  %v120 = vpack.c.bf16 %v115, %v114
  %v121 = vpack.c.bf16 %v117, %v116
  %122 = vst [vmem:[#allocation2] sm:$0xff] %v118
  %123 = vst [vmem:[#allocation2 + $0x8] sm:$0xff] %v119
  %124 = vst [vmem:[#allocation2 + $0x10] sm:$0xff] %v120
  %125 = vst [vmem:[#allocation2 + $0x18] sm:$0xff] %v121
  %126 = vrot.lane.b32.xlu0 %v76, 15
  %v127 = vpop.permute.xlu0 %126
  %128 = vrot.lane.b32.xlu0 %v77, 15
  %v129 = vpop.permute.xlu0 %128
  %130 = vrot.lane.b32.xlu0 %v78, 15
  %v131 = vpop.permute.xlu0 %130
  %132 = vrot.lane.b32.xlu0 %v79, 15
  %v133 = vpop.permute.xlu0 %132
  %vm134 = vcmp.lt.s32.totalorder %v28, 15
  %v135 = vsel %vm134, %v131, %v133
  %v136 = vsel %vm134, %v129, %v131
  %v137 = vsel %vm134, %v127, %v129
  %v138 = vsel %vm134, %v133, %v127
  %v139 = vmul.f32 %v48, %v72
  %v140 = vmul.f32 %v49, %v73
  %v141 = vmul.f32 %v50, %v74
  %v142 = vmul.f32 %v51, %v75
  %v143 = vmul.f32 %v138, %v139
  %v144 = vmul.f32 %v137, %v140
  %v145 = vmul.f32 %v136, %v141
  %v146 = vmul.f32 %v135, %v142
  %147 = vrot.lane.b32.xlu0 %v76, 1
  %v148 = vpop.permute.xlu0 %147
  %149 = vrot.lane.b32.xlu0 %v77, 1
  %v150 = vpop.permute.xlu0 %149
  %151 = vrot.lane.b32.xlu0 %v78, 1
  %v152 = vpop.permute.xlu0 %151
  %153 = vrot.lane.b32.xlu0 %v79, 1
  %v154 = vpop.permute.xlu0 %153
  %vm155 = vcmp.lt.s32.totalorder %v28, 1
  %v156 = vsel %vm155, %v152, %v154
  %v157 = vsel %vm155, %v150, %v152
  %v158 = vsel %vm155, %v148, %v150
  %v159 = vsel %vm155, %v154, %v148
  %v160 = vmul.f32 %v159, %v64
  %v161 = vmul.f32 %v158, %v65
  %v162 = vmul.f32 %v157, %v66
  %v163 = vmul.f32 %v156, %v67
  %v164 = vpack.c.bf16 %v144, %v143
  %v165 = vpack.c.bf16 %v146, %v145
  %v166 = vpack.c.bf16 %v161, %v160
  %v167 = vpack.c.bf16 %v163, %v162
  %168 = vst [vmem:[#allocation2 + $0x20] sm:$0xff] %v164
  %169 = vst [vmem:[#allocation2 + $0x28] sm:$0xff] %v165
  %170 = vst [vmem:[#allocation2 + $0x30] sm:$0xff] %v166
  %171 = vst [vmem:[#allocation2 + $0x38] sm:$0xff] %v167
  %172 = vrot.lane.b32.xlu0 %v76, 127
  %v173 = vpop.permute.xlu0 %172
  %174 = vrot.lane.b32.xlu0 %v77, 127
  %v175 = vpop.permute.xlu0 %174
  %176 = vrot.lane.b32.xlu0 %v78, 127
  %v177 = vpop.permute.xlu0 %176
  %178 = vrot.lane.b32.xlu0 %v79, 127
  %v179 = vpop.permute.xlu0 %178
  %vm180 = vcmp.lt.s32.totalorder %v28, 127
  %v181 = vsel %vm180, %v177, %v179
  %v182 = vsel %vm180, %v175, %v177
  %v183 = vsel %vm180, %v173, %v175
  %v184 = vsel %vm180, %v179, %v173
  %v185 = vmul.f32 %v183, %v72
  %v186 = vmul.f32 %v182, %v73
  %v187 = vmul.f32 %v181, %v74
  %v188 = vmul.f32 %v184, %v75
  %v189 = vpack.c.bf16 %v77, %v76
  %v190 = vpack.c.bf16 %v79, %v78
  %v191 = vpack.c.bf16 %v186, %v185
  %v192 = vpack.c.bf16 %v188, %v187
  %193 = vst [vmem:[#allocation2 + $0x40] sm:$0xff] %v189
  %194 = vst [vmem:[#allocation2 + $0x48] sm:$0xff] %v190
  %195 = vst [vmem:[#allocation2 + $0x50] sm:$0xff] %v191
  %196 = vst [vmem:[#allocation2 + $0x58] sm:$0xff] %v192
  %197 = vrot.lane.b32.xlu0 %v76, 113
  %v198 = vpop.permute.xlu0 %197
  %199 = vrot.lane.b32.xlu0 %v77, 113
  %v200 = vpop.permute.xlu0 %199
  %201 = vrot.lane.b32.xlu0 %v78, 113
  %v202 = vpop.permute.xlu0 %201
  %203 = vrot.lane.b32.xlu0 %v79, 113
  %v204 = vpop.permute.xlu0 %203
  %vm205 = vcmp.lt.s32.totalorder %v28, 113
  %v206 = vsel %vm205, %v202, %v204
  %v207 = vsel %vm205, %v200, %v202
  %v208 = vsel %vm205, %v198, %v200
  %v209 = vsel %vm205, %v204, %v198
  %v210 = vmul.f32 %v56, %v64
  %v211 = vmul.f32 %v57, %v65
  %v212 = vmul.f32 %v58, %v66
  %v213 = vmul.f32 %v59, %v67
  %v214 = vmul.f32 %v208, %v210
  %v215 = vmul.f32 %v207, %v211
  %v216 = vmul.f32 %v206, %v212
  %v217 = vmul.f32 %v209, %v213
  %218 = vrot.lane.b32.xlu0 %v76, 112
  %v219 = vpop.permute.xlu0 %218
  %220 = vrot.lane.b32.xlu0 %v77, 112
  %v221 = vpop.permute.xlu0 %220
  %222 = vrot.lane.b32.xlu0 %v78, 112
  %v223 = vpop.permute.xlu0 %222
  %224 = vrot.lane.b32.xlu0 %v79, 112
  %v225 = vpop.permute.xlu0 %224
  %vm226 = vcmp.lt.s32.totalorder %v28, 112
  %v227 = vsel %vm226, %v223, %v225
  %v228 = vsel %vm226, %v221, %v223
  %v229 = vsel %vm226, %v219, %v221
  %v230 = vsel %vm226, %v225, %v219
  %v231 = vmul.f32 %v229, %v56
  %v232 = vmul.f32 %v228, %v57
  %v233 = vmul.f32 %v227, %v58
  %v234 = vmul.f32 %v230, %v59
  %v235 = vpack.c.bf16 %v215, %v214
  %v236 = vpack.c.bf16 %v217, %v216
  %v237 = vpack.c.bf16 %v232, %v231
  %v238 = vpack.c.bf16 %v234, %v233
  %239 = vst [vmem:[#allocation2 + $0x60] sm:$0xff] %v235
  %240 = vst [vmem:[#allocation2 + $0x68] sm:$0xff] %v236
  %241 = vst [vmem:[#allocation2 + $0x70] sm:$0xff] %v237
  %242 = vst [vmem:[#allocation2 + $0x78] sm:$0xff] %v238
  %243 = vrot.lane.b32.xlu0 %v76, 111
  %v244 = vpop.permute.xlu0 %243
  %245 = vrot.lane.b32.xlu0 %v77, 111
  %v246 = vpop.permute.xlu0 %245
  %247 = vrot.lane.b32.xlu0 %v78, 111
  %v248 = vpop.permute.xlu0 %247
  %249 = vrot.lane.b32.xlu0 %v79, 111
  %v250 = vpop.permute.xlu0 %249
  %vm251 = vcmp.lt.s32.totalorder %v28, 111
  %v252 = vsel %vm251, %v248, %v250
  %v253 = vsel %vm251, %v246, %v248
  %v254 = vsel %vm251, %v244, %v246
  %v255 = vsel %vm251, %v250, %v244
  %v256 = vmul.f32 %v56, %v72
  %v257 = vmul.f32 %v57, %v73
  %v258 = vmul.f32 %v58, %v74
  %v259 = vmul.f32 %v59, %v75
  %v260 = vmul.f32 %v254, %v256
  %v261 = vmul.f32 %v253, %v257
  %v262 = vmul.f32 %v252, %v258
  %v263 = vmul.f32 %v255, %v259
  %v264 = vpack.c.bf16 %v261, %v260
  %v265 = vpack.c.bf16 %v263, %v262
  %v266 = vpack.c.bf16 0.0, 0.0
  %267 = vst [vmem:[#allocation2 + $0x80] sm:$0xff] %v264
  %268 = vst [vmem:[#allocation2 + $0x88] sm:$0xff] %v265
  %269 = vst [vmem:[#allocation2 + $0x90] sm:$0xff] %v266
  %270 = vst [vmem:[#allocation2 + $0x98] sm:$0xff] %v266
  %v271 = vld [vmem:[%s1] sm:$0xf]
  %v272 = vld [vmem:[#allocation2] sm:$0xff]
  %v273 = vld [vmem:[#allocation2 + $0x8] sm:$0xff]
  %v274 = vld [vmem:[#allocation2 + $0x10] sm:$0xff]
  %v275 = vld [vmem:[#allocation2 + $0x18] sm:$0xff]
  %v276 = vld [vmem:[#allocation2 + $0x20] sm:$0xff]
  %v277 = vld [vmem:[#allocation2 + $0x28] sm:$0xff]
  %v278 = vld [vmem:[#allocation2 + $0x30] sm:$0xff]
  %v279 = vld [vmem:[#allocation2 + $0x38] sm:$0xff]
  %v280 = vld [vmem:[#allocation2 + $0x40] sm:$0xff]
  %v281 = vld [vmem:[#allocation2 + $0x48] sm:$0xff]
  %v282 = vld [vmem:[#allocation2 + $0x50] sm:$0xff]
  %v283 = vld [vmem:[#allocation2 + $0x58] sm:$0xff]
  %v284 = vld [vmem:[#allocation2 + $0x60] sm:$0xff]
  %v285 = vld [vmem:[#allocation2 + $0x68] sm:$0xff]
  %v286 = vld [vmem:[#allocation2 + $0x70] sm:$0xff]
  %v287 = vld [vmem:[#allocation2 + $0x78] sm:$0xff]
  %v288 = vld [vmem:[#allocation2 + $0x80] sm:$0xff]
  %v289 = vld [vmem:[#allocation2 + $0x88] sm:$0xff]
  %v290 = vld [vmem:[#allocation2 + $0x90] sm:$0xff]
  %v291 = vld [vmem:[#allocation2 + $0x98] sm:$0xff]
  %v312 = vunpack.c.l.b16 %v272
  %v313 = vunpack.c.h.b16 %v272
  %v314 = vunpack.c.l.b16 %v273
  %v315 = vunpack.c.h.b16 %v273
  %v316 = vunpack.c.l.b16 %v274
  %v317 = vunpack.c.h.b16 %v274
  %v318 = vunpack.c.l.b16 %v275
  %v319 = vunpack.c.h.b16 %v275
  %v320 = vunpack.c.l.b16 %v276
  %v321 = vunpack.c.h.b16 %v276
  %v322 = vunpack.c.l.b16 %v277
  %v323 = vunpack.c.h.b16 %v277
  %v324 = vunpack.c.l.b16 %v278
  %v325 = vunpack.c.h.b16 %v278
  %v326 = vunpack.c.l.b16 %v279
  %v327 = vunpack.c.h.b16 %v279
  %v328 = vunpack.c.l.b16 %v280
  %v329 = vunpack.c.h.b16 %v280
  %v330 = vunpack.c.l.b16 %v281
  %v331 = vunpack.c.h.b16 %v281
  %v332 = vunpack.c.l.b16 %v282
  %v333 = vunpack.c.h.b16 %v282
  %v334 = vunpack.c.l.b16 %v283
  %v335 = vunpack.c.h.b16 %v283
  %v336 = vunpack.c.l.b16 %v284
  %v337 = vunpack.c.h.b16 %v284
  %v338 = vunpack.c.l.b16 %v285
  %v339 = vunpack.c.h.b16 %v285
  %v340 = vunpack.c.l.b16 %v286
  %v341 = vunpack.c.h.b16 %v286
  %v342 = vunpack.c.l.b16 %v287
  %v343 = vunpack.c.h.b16 %v287
  %v344 = vunpack.c.l.b16 %v288
  %v345 = vunpack.c.h.b16 %v288
  %v346 = vunpack.c.l.b16 %v289
  %v347 = vunpack.c.h.b16 %v289
  %v348 = vunpack.c.l.b16 %v290
  %v349 = vunpack.c.h.b16 %v290
  %v350 = vunpack.c.l.b16 %v291
  %v351 = vunpack.c.h.b16 %v291
  %v352 = vpack.c.b16 %v316, %v312
  %v353 = vpack.c.b16 %v317, %v313
  %v354 = vpack.c.b16 %v318, %v314
  %v355 = vpack.c.b16 %v319, %v315
  %v356 = vpack.c.b16 %v324, %v320
  %v357 = vpack.c.b16 %v325, %v321
  %v358 = vpack.c.b16 %v326, %v322
  %v359 = vpack.c.b16 %v327, %v323
  %v360 = vpack.c.b16 %v332, %v328
  %v361 = vpack.c.b16 %v333, %v329
  %v362 = vpack.c.b16 %v334, %v330
  %v363 = vpack.c.b16 %v335, %v331
  %v364 = vpack.c.b16 %v340, %v336
  %v365 = vpack.c.b16 %v341, %v337
  %v366 = vpack.c.b16 %v342, %v338
  %v367 = vpack.c.b16 %v343, %v339
  %v368 = vpack.c.b16 %v348, %v344
  %v369 = vpack.c.b16 %v349, %v345
  %v370 = vpack.c.b16 %v350, %v346
  %v371 = vpack.c.b16 %v351, %v347
  %vm392 = vcmask 654336
  %v394 = vsel %vm392, %v271, 0
  %396 = vmatpush.bf16.msra.mxu0 0
  %397 = vmatpush.bf16.msra.mxu0 0
  %398 = vmatpush.bf16.msra.mxu0 0
  %399 = vmatpush.bf16.msra.mxu0 %v368
  %400 = vmatpush.bf16.msra.mxu0 %v364
  %401 = vmatpush.bf16.msra.mxu0 %v360
  %402 = vmatpush.bf16.msra.mxu0 %v356
  %403 = vmatpush.bf16.msra.mxu0 %v352
  %404 = vmatmul.bf16.gmra.mxu0 %v394
  %v405 = vpop.f32.mrf.mxu0
  %v406 = vadd.f32 0.0, %v405
  %v407 = vpop.f32.mrf.mxu0
  %408 = vdwg.mxu0
  %409 = vmatpush.bf16.msra.mxu0 0
  %410 = vmatpush.bf16.msra.mxu0 0
  %411 = vmatpush.bf16.msra.mxu0 0
  %412 = vmatpush.bf16.msra.mxu0 %v369
  %413 = vmatpush.bf16.msra.mxu0 %v365
  %414 = vmatpush.bf16.msra.mxu0 %v361
  %415 = vmatpush.bf16.msra.mxu0 %v357
  %416 = vmatpush.bf16.msra.mxu0 %v353
  %417 = vmatmul.bf16.gmra.mxu0 %v394
  %v418 = vpop.f32.mrf.mxu0
  %v419 = vadd.f32 0.0, %v418
  %v420 = vpop.f32.mrf.mxu0
  %421 = vdwg.mxu0
  %422 = vmatpush.bf16.msra.mxu0 0
  %423 = vmatpush.bf16.msra.mxu0 0
  %424 = vmatpush.bf16.msra.mxu0 0
  %425 = vmatpush.bf16.msra.mxu0 %v370
  %426 = vmatpush.bf16.msra.mxu0 %v366
  %427 = vmatpush.bf16.msra.mxu0 %v362
  %428 = vmatpush.bf16.msra.mxu0 %v358
  %429 = vmatpush.bf16.msra.mxu0 %v354
  %430 = vmatmul.bf16.gmra.mxu0 %v394
  %v431 = vpop.f32.mrf.mxu0
  %v432 = vadd.f32 0.0, %v431
  %v433 = vpop.f32.mrf.mxu0
  %434 = vdwg.mxu0
  %435 = vmatpush.bf16.msra.mxu0 0
  %436 = vmatpush.bf16.msra.mxu0 0
  %437 = vmatpush.bf16.msra.mxu0 0
  %438 = vmatpush.bf16.msra.mxu0 %v371
  %439 = vmatpush.bf16.msra.mxu0 %v367
  %440 = vmatpush.bf16.msra.mxu0 %v363
  %441 = vmatpush.bf16.msra.mxu0 %v359
  %442 = vmatpush.bf16.msra.mxu0 %v355
  %443 = vmatmul.bf16.gmra.mxu0 %v394
  %v444 = vpop.f32.mrf.mxu0
  %v445 = vadd.f32 0.0, %v444
  %v446 = vpop.f32.mrf.mxu0
  %447 = vdwg.mxu0
  %v448 = vadd.f32 %v406, %v419
  %v449 = vadd.f32 %v448, %v432
  %v450 = vadd.f32 %v449, %v445
  %451 = vadd.xlane.f32.xlu0 %v450
  %v452 = vpop.xlane.xlu0 %451
  %v453 = vmul.f32 %v406, %v406
  %v454 = vmul.f32 %v419, %v419
  %v455 = vmul.f32 %v432, %v432
  %v456 = vmul.f32 %v445, %v445
  %v457 = vadd.f32 %v453, %v454
  %v458 = vadd.f32 %v457, %v455
  %v459 = vadd.f32 %v458, %v456
  %460 = vadd.xlane.f32.xlu0 %v459
  %v461 = vpop.xlane.xlu0 %460
  %v462 = vmul.f32 %v452, 0.001953125
  %v463 = vmul.f32 %v461, 0.001953125
  %v464 = vmul.f32 %v462, %v462
  %v465 = vsub.f32 %v463, %v464
  %v466 = vadd.f32 %v465, 1e-05
  %v467 = vrsqrt.pop %v466
  %v468 = vmul.f32 %v467, %v466
  %v469 = vmul.f32 %v468, %v467
  %v470 = vmul.f32 0.5, %v469
  %v471 = vsub.f32 1.5, %v470
  %v472 = vmul.f32 %v467, %v471
  %vm473 = vweird.f32 %v466
  %vm474 = vweird.f32 %v467
  %vm475 = vmor %vm473, %vm474
  %v476 = vsel %vm475, %v467, %v472
  %v477 = vld [vmem:[%s2] sm:$0xff]
  %v478 = vmul.f32 %v476, %v477
  %v479 = vsub.f32 %v406, %v462
  %v480 = vsub.f32 %v419, %v462
  %v481 = vsub.f32 %v432, %v462
  %v482 = vsub.f32 %v445, %v462
  %484 = vset.pattern.permute.xlu0 0
  %485 = vperm.xlu0 %484, %v478
  %v486 = vpop.permute.xlu0 %485
  %v488 = vmul.f32 %v479, %v486
  %v489 = vmul.f32 %v480, %v486
  %v490 = vmul.f32 %v481, %v486
  %v491 = vmul.f32 %v482, %v486
  %v492 = vld [vmem:[%s3] sm:$0xff]
  %494 = vset.pattern.permute.xlu0 0
  %495 = vperm.xlu0 %494, %v492
  %v496 = vpop.permute.xlu0 %495
  %v498 = vadd.f32 %v488, %v496
  %v499 = vadd.f32 %v489, %v496
  %v500 = vadd.f32 %v490, %v496
  %v501 = vadd.f32 %v491, %v496
  %v502 = vmax.f32 %v498, 0.0
  %v503 = vmax.f32 %v499, 0.0
  %v504 = vmax.f32 %v500, 0.0
  %v505 = vmax.f32 %v501, 0.0
  %506 = vrot.lane.b32.xlu0 %v502, 17
  %v507 = vpop.permute.xlu0 %506
  %508 = vrot.lane.b32.xlu0 %v503, 17
  %v509 = vpop.permute.xlu0 %508
  %510 = vrot.lane.b32.xlu0 %v504, 17
  %v511 = vpop.permute.xlu0 %510
  %512 = vrot.lane.b32.xlu0 %v505, 17
  %v513 = vpop.permute.xlu0 %512
  %v514 = vsel %vm88, %v511, %v513
  %v515 = vsel %vm88, %v509, %v511
  %v516 = vsel %vm88, %v507, %v509
  %v517 = vsel %vm88, %v513, %v507
  %v518 = vmul.f32 %v517, %v93
  %v519 = vmul.f32 %v516, %v94
  %v520 = vmul.f32 %v515, %v95
  %v521 = vmul.f32 %v514, %v96
  %522 = vrot.lane.b32.xlu0 %v502, 16
  %v523 = vpop.permute.xlu0 %522
  %524 = vrot.lane.b32.xlu0 %v503, 16
  %v525 = vpop.permute.xlu0 %524
  %526 = vrot.lane.b32.xlu0 %v504, 16
  %v527 = vpop.permute.xlu0 %526
  %528 = vrot.lane.b32.xlu0 %v505, 16
  %v529 = vpop.permute.xlu0 %528
  %v530 = vsel %vm109, %v527, %v529
  %v531 = vsel %vm109, %v525, %v527
  %v532 = vsel %vm109, %v523, %v525
  %v533 = vsel %vm109, %v529, %v523
  %v534 = vmul.f32 %v533, %v48
  %v535 = vmul.f32 %v532, %v49
  %v536 = vmul.f32 %v531, %v50
  %v537 = vmul.f32 %v530, %v51
  %v538 = vpack.c.bf16 %v519, %v518
  %v539 = vpack.c.bf16 %v521, %v520
  %v540 = vpack.c.bf16 %v535, %v534
  %v541 = vpack.c.bf16 %v537, %v536
  %542 = vst [vmem:[#allocation2] sm:$0xff] %v538
  %543 = vst [vmem:[#allocation2 + $0x8] sm:$0xff] %v539
  %544 = vst [vmem:[#allocation2 + $0x10] sm:$0xff] %v540
  %545 = vst [vmem:[#allocation2 + $0x18] sm:$0xff] %v541
  %546 = vrot.lane.b32.xlu0 %v502, 15
  %v547 = vpop.permute.xlu0 %546
  %548 = vrot.lane.b32.xlu0 %v503, 15
  %v549 = vpop.permute.xlu0 %548
  %550 = vrot.lane.b32.xlu0 %v504, 15
  %v551 = vpop.permute.xlu0 %550
  %552 = vrot.lane.b32.xlu0 %v505, 15
  %v553 = vpop.permute.xlu0 %552
  %v554 = vsel %vm134, %v551, %v553
  %v555 = vsel %vm134, %v549, %v551
  %v556 = vsel %vm134, %v547, %v549
  %v557 = vsel %vm134, %v553, %v547
  %v558 = vmul.f32 %v557, %v139
  %v559 = vmul.f32 %v556, %v140
  %v560 = vmul.f32 %v555, %v141
  %v561 = vmul.f32 %v554, %v142
  %562 = vrot.lane.b32.xlu0 %v502, 1
  %v563 = vpop.permute.xlu0 %562
  %564 = vrot.lane.b32.xlu0 %v503, 1
  %v565 = vpop.permute.xlu0 %564
  %566 = vrot.lane.b32.xlu0 %v504, 1
  %v567 = vpop.permute.xlu0 %566
  %568 = vrot.lane.b32.xlu0 %v505, 1
  %v569 = vpop.permute.xlu0 %568
  %v570 = vsel %vm155, %v567, %v569
  %v571 = vsel %vm155, %v565, %v567
  %v572 = vsel %vm155, %v563, %v565
  %v573 = vsel %vm155, %v569, %v563
  %v574 = vmul.f32 %v573, %v64
  %v575 = vmul.f32 %v572, %v65
  %v576 = vmul.f32 %v571, %v66
  %v577 = vmul.f32 %v570, %v67
  %v578 = vpack.c.bf16 %v559, %v558
  %v579 = vpack.c.bf16 %v561, %v560
  %v580 = vpack.c.bf16 %v575, %v574
  %v581 = vpack.c.bf16 %v577, %v576
  %582 = vst [vmem:[#allocation2 + $0x20] sm:$0xff] %v578
  %583 = vst [vmem:[#allocation2 + $0x28] sm:$0xff] %v579
  %584 = vst [vmem:[#allocation2 + $0x30] sm:$0xff] %v580
  %585 = vst [vmem:[#allocation2 + $0x38] sm:$0xff] %v581
  %586 = vrot.lane.b32.xlu0 %v502, 127
  %v587 = vpop.permute.xlu0 %586
  %588 = vrot.lane.b32.xlu0 %v503, 127
  %v589 = vpop.permute.xlu0 %588
  %590 = vrot.lane.b32.xlu0 %v504, 127
  %v591 = vpop.permute.xlu0 %590
  %592 = vrot.lane.b32.xlu0 %v505, 127
  %v593 = vpop.permute.xlu0 %592
  %v594 = vsel %vm180, %v591, %v593
  %v595 = vsel %vm180, %v589, %v591
  %v596 = vsel %vm180, %v587, %v589
  %v597 = vsel %vm180, %v593, %v587
  %v598 = vmul.f32 %v596, %v72
  %v599 = vmul.f32 %v595, %v73
  %v600 = vmul.f32 %v594, %v74
  %v601 = vmul.f32 %v597, %v75
  %v602 = vpack.c.bf16 %v503, %v502
  %v603 = vpack.c.bf16 %v505, %v504
  %v604 = vpack.c.bf16 %v599, %v598
  %v605 = vpack.c.bf16 %v601, %v600
  %606 = vst [vmem:[#allocation2 + $0x40] sm:$0xff] %v602
  %607 = vst [vmem:[#allocation2 + $0x48] sm:$0xff] %v603
  %608 = vst [vmem:[#allocation2 + $0x50] sm:$0xff] %v604
  %609 = vst [vmem:[#allocation2 + $0x58] sm:$0xff] %v605
  %610 = vrot.lane.b32.xlu0 %v502, 113
  %v611 = vpop.permute.xlu0 %610
  %612 = vrot.lane.b32.xlu0 %v503, 113
  %v613 = vpop.permute.xlu0 %612
  %614 = vrot.lane.b32.xlu0 %v504, 113
  %v615 = vpop.permute.xlu0 %614
  %616 = vrot.lane.b32.xlu0 %v505, 113
  %v617 = vpop.permute.xlu0 %616
  %v618 = vsel %vm205, %v615, %v617
  %v619 = vsel %vm205, %v613, %v615
  %v620 = vsel %vm205, %v611, %v613
  %v621 = vsel %vm205, %v617, %v611
  %v622 = vmul.f32 %v620, %v210
  %v623 = vmul.f32 %v619, %v211
  %v624 = vmul.f32 %v618, %v212
  %v625 = vmul.f32 %v621, %v213
  %626 = vrot.lane.b32.xlu0 %v502, 112
  %v627 = vpop.permute.xlu0 %626
  %628 = vrot.lane.b32.xlu0 %v503, 112
  %v629 = vpop.permute.xlu0 %628
  %630 = vrot.lane.b32.xlu0 %v504, 112
  %v631 = vpop.permute.xlu0 %630
  %632 = vrot.lane.b32.xlu0 %v505, 112
  %v633 = vpop.permute.xlu0 %632
  %v634 = vsel %vm226, %v631, %v633
  %v635 = vsel %vm226, %v629, %v631
  %v636 = vsel %vm226, %v627, %v629
  %v637 = vsel %vm226, %v633, %v627
  %v638 = vmul.f32 %v636, %v56
  %v639 = vmul.f32 %v635, %v57
  %v640 = vmul.f32 %v634, %v58
  %v641 = vmul.f32 %v637, %v59
  %v642 = vpack.c.bf16 %v623, %v622
  %v643 = vpack.c.bf16 %v625, %v624
  %v644 = vpack.c.bf16 %v639, %v638
  %v645 = vpack.c.bf16 %v641, %v640
  %646 = vst [vmem:[#allocation2 + $0x60] sm:$0xff] %v642
  %647 = vst [vmem:[#allocation2 + $0x68] sm:$0xff] %v643
  %648 = vst [vmem:[#allocation2 + $0x70] sm:$0xff] %v644
  %649 = vst [vmem:[#allocation2 + $0x78] sm:$0xff] %v645
  %650 = vrot.lane.b32.xlu0 %v502, 111
  %v651 = vpop.permute.xlu0 %650
  %652 = vrot.lane.b32.xlu0 %v503, 111
  %v653 = vpop.permute.xlu0 %652
  %654 = vrot.lane.b32.xlu0 %v504, 111
  %v655 = vpop.permute.xlu0 %654
  %656 = vrot.lane.b32.xlu0 %v505, 111
  %v657 = vpop.permute.xlu0 %656
  %v658 = vsel %vm251, %v655, %v657
  %v659 = vsel %vm251, %v653, %v655
  %v660 = vsel %vm251, %v651, %v653
  %v661 = vsel %vm251, %v657, %v651
  %v662 = vmul.f32 %v660, %v256
  %v663 = vmul.f32 %v659, %v257
  %v664 = vmul.f32 %v658, %v258
  %v665 = vmul.f32 %v661, %v259
  %v666 = vpack.c.bf16 %v663, %v662
  %v667 = vpack.c.bf16 %v665, %v664
  %668 = vst [vmem:[#allocation2 + $0x80] sm:$0xff] %v666
  %669 = vst [vmem:[#allocation2 + $0x88] sm:$0xff] %v667
  %670 = vst [vmem:[#allocation2 + $0x90] sm:$0xff] %v266
  %671 = vst [vmem:[#allocation2 + $0x98] sm:$0xff] %v266
  %v672 = vld [vmem:[%s4] sm:$0xf]
  %v673 = vld [vmem:[#allocation2] sm:$0xff]
  %v674 = vld [vmem:[#allocation2 + $0x8] sm:$0xff]
  %v675 = vld [vmem:[#allocation2 + $0x10] sm:$0xff]
  %v676 = vld [vmem:[#allocation2 + $0x18] sm:$0xff]
  %v677 = vld [vmem:[#allocation2 + $0x20] sm:$0xff]
  %v678 = vld [vmem:[#allocation2 + $0x28] sm:$0xff]
  %v679 = vld [vmem:[#allocation2 + $0x30] sm:$0xff]
  %v680 = vld [vmem:[#allocation2 + $0x38] sm:$0xff]
  %v681 = vld [vmem:[#allocation2 + $0x40] sm:$0xff]
  %v682 = vld [vmem:[#allocation2 + $0x48] sm:$0xff]
  %v683 = vld [vmem:[#allocation2 + $0x50] sm:$0xff]
  %v684 = vld [vmem:[#allocation2 + $0x58] sm:$0xff]
  %v685 = vld [vmem:[#allocation2 + $0x60] sm:$0xff]
  %v686 = vld [vmem:[#allocation2 + $0x68] sm:$0xff]
  %v687 = vld [vmem:[#allocation2 + $0x70] sm:$0xff]
  %v688 = vld [vmem:[#allocation2 + $0x78] sm:$0xff]
  %v689 = vld [vmem:[#allocation2 + $0x80] sm:$0xff]
  %v690 = vld [vmem:[#allocation2 + $0x88] sm:$0xff]
  %v691 = vld [vmem:[#allocation2 + $0x90] sm:$0xff]
  %v692 = vld [vmem:[#allocation2 + $0x98] sm:$0xff]
  %v713 = vunpack.c.l.b16 %v673
  %v714 = vunpack.c.h.b16 %v673
  %v715 = vunpack.c.l.b16 %v674
  %v716 = vunpack.c.h.b16 %v674
  %v717 = vunpack.c.l.b16 %v675
  %v718 = vunpack.c.h.b16 %v675
  %v719 = vunpack.c.l.b16 %v676
  %v720 = vunpack.c.h.b16 %v676
  %v721 = vunpack.c.l.b16 %v677
  %v722 = vunpack.c.h.b16 %v677
  %v723 = vunpack.c.l.b16 %v678
  %v724 = vunpack.c.h.b16 %v678
  %v725 = vunpack.c.l.b16 %v679
  %v726 = vunpack.c.h.b16 %v679
  %v727 = vunpack.c.l.b16 %v680
  %v728 = vunpack.c.h.b16 %v680
  %v729 = vunpack.c.l.b16 %v681
  %v730 = vunpack.c.h.b16 %v681
  %v731 = vunpack.c.l.b16 %v682
  %v732 = vunpack.c.h.b16 %v682
  %v733 = vunpack.c.l.b16 %v683
  %v734 = vunpack.c.h.b16 %v683
  %v735 = vunpack.c.l.b16 %v684
  %v736 = vunpack.c.h.b16 %v684
  %v737 = vunpack.c.l.b16 %v685
  %v738 = vunpack.c.h.b16 %v685
  %v739 = vunpack.c.l.b16 %v686
  %v740 = vunpack.c.h.b16 %v686
  %v741 = vunpack.c.l.b16 %v687
  %v742 = vunpack.c.h.b16 %v687
  %v743 = vunpack.c.l.b16 %v688
  %v744 = vunpack.c.h.b16 %v688
  %v745 = vunpack.c.l.b16 %v689
  %v746 = vunpack.c.h.b16 %v689
  %v747 = vunpack.c.l.b16 %v690
  %v748 = vunpack.c.h.b16 %v690
  %v749 = vunpack.c.l.b16 %v691
  %v750 = vunpack.c.h.b16 %v691
  %v751 = vunpack.c.l.b16 %v692
  %v752 = vunpack.c.h.b16 %v692
  %v753 = vpack.c.b16 %v717, %v713
  %v754 = vpack.c.b16 %v718, %v714
  %v755 = vpack.c.b16 %v719, %v715
  %v756 = vpack.c.b16 %v720, %v716
  %v757 = vpack.c.b16 %v725, %v721
  %v758 = vpack.c.b16 %v726, %v722
  %v759 = vpack.c.b16 %v727, %v723
  %v760 = vpack.c.b16 %v728, %v724
  %v761 = vpack.c.b16 %v733, %v729
  %v762 = vpack.c.b16 %v734, %v730
  %v763 = vpack.c.b16 %v735, %v731
  %v764 = vpack.c.b16 %v736, %v732
  %v765 = vpack.c.b16 %v741, %v737
  %v766 = vpack.c.b16 %v742, %v738
  %v767 = vpack.c.b16 %v743, %v739
  %v768 = vpack.c.b16 %v744, %v740
  %v769 = vpack.c.b16 %v749, %v745
  %v770 = vpack.c.b16 %v750, %v746
  %v771 = vpack.c.b16 %v751, %v747
  %v772 = vpack.c.b16 %v752, %v748
  %v794 = vsel %vm392, %v672, 0
  %796 = vmatpush.bf16.msra.mxu0 0
  %797 = vmatpush.bf16.msra.mxu0 0
  %798 = vmatpush.bf16.msra.mxu0 0
  %799 = vmatpush.bf16.msra.mxu0 %v769
  %800 = vmatpush.bf16.msra.mxu0 %v765
  %801 = vmatpush.bf16.msra.mxu0 %v761
  %802 = vmatpush.bf16.msra.mxu0 %v757
  %803 = vmatpush.bf16.msra.mxu0 %v753
  %804 = vmatmul.bf16.gmra.mxu0 %v794
  %v805 = vpop.f32.mrf.mxu0
  %v806 = vadd.f32 0.0, %v805
  %v807 = vpop.f32.mrf.mxu0
  %808 = vdwg.mxu0
  %809 = vmatpush.bf16.msra.mxu0 0
  %810 = vmatpush.bf16.msra.mxu0 0
  %811 = vmatpush.bf16.msra.mxu0 0
  %812 = vmatpush.bf16.msra.mxu0 %v770
  %813 = vmatpush.bf16.msra.mxu0 %v766
  %814 = vmatpush.bf16.msra.mxu0 %v762
  %815 = vmatpush.bf16.msra.mxu0 %v758
  %816 = vmatpush.bf16.msra.mxu0 %v754
  %817 = vmatmul.bf16.gmra.mxu0 %v794
  %v818 = vpop.f32.mrf.mxu0
  %v819 = vadd.f32 0.0, %v818
  %v820 = vpop.f32.mrf.mxu0
  %821 = vdwg.mxu0
  %822 = vmatpush.bf16.msra.mxu0 0
  %823 = vmatpush.bf16.msra.mxu0 0
  %824 = vmatpush.bf16.msra.mxu0 0
  %825 = vmatpush.bf16.msra.mxu0 %v771
  %826 = vmatpush.bf16.msra.mxu0 %v767
  %827 = vmatpush.bf16.msra.mxu0 %v763
  %828 = vmatpush.bf16.msra.mxu0 %v759
  %829 = vmatpush.bf16.msra.mxu0 %v755
  %830 = vmatmul.bf16.gmra.mxu0 %v794
  %v831 = vpop.f32.mrf.mxu0
  %v832 = vadd.f32 0.0, %v831
  %v833 = vpop.f32.mrf.mxu0
  %834 = vdwg.mxu0
  %835 = vmatpush.bf16.msra.mxu0 0
  %836 = vmatpush.bf16.msra.mxu0 0
  %837 = vmatpush.bf16.msra.mxu0 0
  %838 = vmatpush.bf16.msra.mxu0 %v772
  %839 = vmatpush.bf16.msra.mxu0 %v768
  %840 = vmatpush.bf16.msra.mxu0 %v764
  %841 = vmatpush.bf16.msra.mxu0 %v760
  %842 = vmatpush.bf16.msra.mxu0 %v756
  %843 = vmatmul.bf16.gmra.mxu0 %v794
  %v844 = vpop.f32.mrf.mxu0
  %v845 = vadd.f32 0.0, %v844
  %v846 = vpop.f32.mrf.mxu0
  %847 = vdwg.mxu0
  %v848 = vadd.f32 %v806, %v819
  %v849 = vadd.f32 %v848, %v832
  %v850 = vadd.f32 %v849, %v845
  %851 = vadd.xlane.f32.xlu0 %v850
  %v852 = vpop.xlane.xlu0 %851
  %v853 = vmul.f32 %v806, %v806
  %v854 = vmul.f32 %v819, %v819
  %v855 = vmul.f32 %v832, %v832
  %v856 = vmul.f32 %v845, %v845
  %v857 = vadd.f32 %v853, %v854
  %v858 = vadd.f32 %v857, %v855
  %v859 = vadd.f32 %v858, %v856
  %860 = vadd.xlane.f32.xlu0 %v859
  %v861 = vpop.xlane.xlu0 %860
  %v862 = vmul.f32 %v852, 0.001953125
  %v863 = vmul.f32 %v861, 0.001953125
  %v864 = vmul.f32 %v862, %v862
  %v865 = vsub.f32 %v863, %v864
  %v866 = vadd.f32 %v865, 1e-05
  %v867 = vrsqrt.pop %v866
  %v868 = vmul.f32 %v867, %v866
  %v869 = vmul.f32 %v868, %v867
  %v870 = vmul.f32 0.5, %v869
  %v871 = vsub.f32 1.5, %v870
  %v872 = vmul.f32 %v867, %v871
  %vm873 = vweird.f32 %v866
  %vm874 = vweird.f32 %v867
  %vm875 = vmor %vm873, %vm874
  %v876 = vsel %vm875, %v867, %v872
  %v877 = vld [vmem:[%s5] sm:$0xff]
  %v878 = vmul.f32 %v876, %v877
  %v879 = vsub.f32 %v806, %v862
  %v880 = vsub.f32 %v819, %v862
  %v881 = vsub.f32 %v832, %v862
  %v882 = vsub.f32 %v845, %v862
  %884 = vset.pattern.permute.xlu0 0
  %885 = vperm.xlu0 %884, %v878
  %v886 = vpop.permute.xlu0 %885
  %v888 = vmul.f32 %v879, %v886
  %v889 = vmul.f32 %v880, %v886
  %v890 = vmul.f32 %v881, %v886
  %v891 = vmul.f32 %v882, %v886
  %v892 = vld [vmem:[%s6] sm:$0xff]
  %894 = vset.pattern.permute.xlu0 0
  %895 = vperm.xlu0 %894, %v892
  %v896 = vpop.permute.xlu0 %895
  %v898 = vadd.f32 %v888, %v896
  %v899 = vadd.f32 %v889, %v896
  %v900 = vadd.f32 %v890, %v896
  %v901 = vadd.f32 %v891, %v896
  %v902 = vadd.f32 %v898, %v76
  %v903 = vadd.f32 %v899, %v77
  %v904 = vadd.f32 %v900, %v78
  %v905 = vadd.f32 %v901, %v79
  %v906 = vmax.f32 %v902, 0.0
  %v907 = vmax.f32 %v903, 0.0
  %v908 = vmax.f32 %v904, 0.0
  %v909 = vmax.f32 %v905, 0.0
  %910 = vst [vmem:[%s7] sm:$0xff] %v906
  %911 = vst [vmem:[%s7 + $0x8] sm:$0xff] %v907
  %912 = vst [vmem:[%s7 + $0x10] sm:$0xff] %v908
  %913 = vst [vmem:[%s7 + $0x18] sm:$0xff] %v909
  // Predicated region
  $region30: #{residual_block.1} parent=0 // pred_check
    _
  $region31: #{residual_block.1} parent=0 // pred_check_branch
    %915 = sbr.rel (0) target = $region33
  $region32: #{residual_block.1} parent=0 // pred_region
    _
  $region33: #{residual_block.1} parent=0 // pred_fallthru
    _
  // Predicated region
  $region34: #{residual_block.1} parent=0 // pred_check
    _
  $region35: #{residual_block.1} parent=0 // pred_check_branch
    %917 = sbr.rel (0) target = $region37
  $region36: #{residual_block.1} parent=0 // pred_region
    _
  $region37: #{residual_block.1} parent=0 // pred_fallthru
    _

</llo_original>
